<compile_context>
chip_gen: v5e
topology: v5e:2x2
jax: 0.10.0
libtpu: 0.0.40
codegen_flags: <defaults>
</compile_context>

<pallas_src>
import functools

import jax
import jax.numpy as jnp
from jax import lax
from jax.experimental import pallas as pl
from jax.experimental.pallas import tpu as pltpu

_LANE = 128
_ROW_TILE = 4096                    # 4096 x 128 f32 = 2 MiB streamed block
_NUM_CORE_SPLITS = 2                # leading "parallel" grid axis (v7x megacore)
_VMEM_LIMIT_BYTES = 32 * 1024 * 1024


def _make_kernel(rows, row_tile, steps_per_core, n_bce):
    """Build the fused kernel with all static shape constants closed over."""
    last_step = steps_per_core - 1

    def kernel(img_ref, enc_ref, logit_ref, fp_ref, o_ref, acc_ref):
        core = pl.program_id(0)      # megacore split axis ("parallel")
        step = pl.program_id(1)      # streaming / reduction axis ("arbitrary")

        # ---- MSE partial: masked elementwise accumulate (pure VPU) ----
        # Logical (un-clamped) block index -> global row offset.  Rows past
        # `rows` belong either to the cdiv tail padding or to a clamped
        # duplicate block on the other core; the mask zeroes both.
        logical_block = core * steps_per_core + step
        row0 = logical_block * row_tile
        row_ids = row0 + lax.broadcasted_iota(jnp.int32, (row_tile, 1), 0)
        valid = row_ids < rows

        d = img_ref[...].astype(jnp.float32) - enc_ref[...].astype(jnp.float32)
        sq = jnp.where(valid, d * d, 0.0)

        @pl.when(step == 0)
        def _():
            acc_ref[...] = sq        # direct write: skip zero-init round trip

        @pl.when(step != 0)
        def _():
            acc_ref[...] += sq

        # ---- epilogue: one cross-lane reduce + tiny BCE, once per core ----
        @pl.when(step == last_step)
        def _():
            mse_p = jnp.sum(acc_ref[...])

            # BCE-with-logits, numerically stable form.  Zero-padded BCE
            # elements are NOT neutral (x=0, y=0 contributes log 2), so mask
            # them out explicitly by flat element index.
            x = logit_ref[...].astype(jnp.float32)
            y = fp_ref[...].astype(jnp.float32)
            bce = jnp.maximum(x, 0.0) - x * y + jnp.log1p(jnp.exp(-jnp.abs(x)))
            r = lax.broadcasted_iota(jnp.int32, x.shape, 0)
            c = lax.broadcasted_iota(jnp.int32, x.shape, 1)
            bce = jnp.where(r * _LANE + c < n_bce, bce, 0.0)
            bce_p = jnp.where(core == 0, jnp.sum(bce), 0.0)

            # Per-core output block: lane 0 = MSE partial, lane 1 = BCE.
            lane = lax.broadcasted_iota(jnp.int32, o_ref.shape, 2)
            o_ref[...] = jnp.where(lane == 0, mse_p,
                                   jnp.where(lane == 1, bce_p, 0.0))

    return kernel


def _to_2d_padded(a):
    """Flatten to (rows, 128), zero-padding the tail. Returns (arr2d, true_n)."""
    flat = a.reshape(-1)
    n = flat.size
    pad = (-n) % _LANE
    if pad:
        flat = jnp.pad(flat, (0, pad))
    return flat.reshape(-1, _LANE), n


def _fused_sums(image, encoder_out, decoder_logits, fingerprint):
    # Zero-padding is neutral for the MSE stream (both operands padded with 0
    # -> diff 0); the BCE pad is masked inside the kernel.
    img2d, n_img = _to_2d_padded(image)
    enc2d, n_enc = _to_2d_padded(encoder_out)
    log2d, n_bce = _to_2d_padded(decoder_logits)
    fp2d, n_fp = _to_2d_padded(fingerprint)
    assert n_img == n_enc, "image / encoder_out element counts must match"
    assert n_bce == n_fp, "decoder_logits / fingerprint element counts must match"

    rows = img2d.shape[0]
    bce_rows = log2d.shape[0]

    # Fixed big tile; only capped for tiny inputs so the block never exceeds
    # the (padded) array extent while staying (8,128)-aligned when possible.
    if rows >= 8:
        row_tile = min(_ROW_TILE, (rows // 8) * 8)
    else:
        row_tile = rows
    total_blocks = (rows + row_tile - 1) // row_tile
    steps_per_core = (total_blocks + _NUM_CORE_SPLITS - 1) // _NUM_CORE_SPLITS
    last_block = total_blocks - 1

    def mse_map(c, i):
        # Clamp so the DMA never targets a fully out-of-range block; the
        # in-kernel row mask zeroes any duplicated / padded rows.
        return (jnp.minimum(c * steps_per_core + i, last_block), 0)

    kernel = _make_kernel(rows, row_tile, steps_per_core, n_bce)

    out = pl.pallas_call(
        kernel,
        out_shape=jax.ShapeDtypeStruct((_NUM_CORE_SPLITS, 8, _LANE),
                                       jnp.float32),
        grid_spec=pltpu.PrefetchScalarGridSpec(
            num_scalar_prefetch=0,
            grid=(_NUM_CORE_SPLITS, steps_per_core),
            in_specs=[
                pl.BlockSpec((row_tile, _LANE), mse_map),
                pl.BlockSpec((row_tile, _LANE), mse_map),
                # Tiny BCE operands: single resident block (constant index_map).
                pl.BlockSpec((bce_rows, _LANE), lambda c, i: (0, 0)),
                pl.BlockSpec((bce_rows, _LANE), lambda c, i: (0, 0)),
            ],
            out_specs=pl.BlockSpec((1, 8, _LANE), lambda c, i: (c, 0, 0)),
            scratch_shapes=[pltpu.VMEM((row_tile, _LANE), jnp.float32)],
        ),
        compiler_params=pltpu.CompilerParams(
            dimension_semantics=("parallel", "arbitrary"),
            vmem_limit_bytes=_VMEM_LIMIT_BYTES),
    )(img2d, enc2d, log2d, fp2d)

    mse_sum = jnp.sum(out[:, 0, 0])      # sum of per-core partials
    bce_sum = out[0, 0, 1]               # BCE computed on core 0 only
    return mse_sum, bce_sum, n_img, n_bce


@functools.partial(jax.jit, static_argnames=("mse_weight", "bce_weight",
                                             "active_mse_weight"))
def stegastamp_loss(image, encoder_out, decoder_logits, fingerprint,
                    *, mse_weight, bce_weight, active_mse_weight):
    """JAX/Pallas equivalent of StegaStampLoss.forward.

    mse   = mean((image - encoder_out)^2)                    (nn.MSELoss)
    bce   = mean(BCEWithLogits(decoder_logits, fingerprint)) (nn.BCEWithLogitsLoss)
    total = active_mse_weight * mse + bce_weight * bce

    `active_mse_weight` is the module's Python-side state (starts at 0; only
    update_mse_weight() changes it), so it is passed explicitly here.
    """
    del mse_weight  # only used by update_mse_weight(), not by forward()

    mse_sum, bce_sum, n_img, n_bce = _fused_sums(
        image, encoder_out, decoder_logits, fingerprint)
    mse_loss = mse_sum / jnp.float32(n_img)
    bce_loss = bce_sum / jnp.float32(n_bce)
    total = (jnp.float32(active_mse_weight) * mse_loss
             + jnp.float32(bce_weight) * bce_loss)
    return dict(mse=mse_loss, bce=bce_loss, total=total)


if __name__ == "__main__":
    key = jax.random.PRNGKey(0)
    k1, k2, k3, k4 = jax.random.split(key, 4)

    # Shapes implied by the forward pass (NCHW image / encoder, (B, L) bits).
    # L = 100 deliberately exercises the pad-and-mask path for the BCE term.
    B, C, H, W = 2, 4, 16, 16
    L = 100

    image = jax.random.uniform(k1, (B, C, H, W), dtype=jnp.float32)
    encoder_out = jax.random.uniform(k2, (B, C, H, W), dtype=jnp.float32)
    decoder_logits = jax.random.normal(k3, (B, L), dtype=jnp.float32)
    fingerprint = (jax.random.uniform(k4, (B, L)) > 0.5).astype(jnp.float32)

    # Module __init__ args; forward uses active_mse_weight and bce_weight.
    mse_weight = 1.0
    bce_weight = 1.0
    active_mse_weight = 0.5   # nonzero to exercise both terms of `total`

    out = stegastamp_loss(image, encoder_out, decoder_logits, fingerprint,
                          mse_weight=mse_weight, bce_weight=bce_weight,
                          active_mse_weight=active_mse_weight)
    jax.block_until_ready(out)

    # Correctness check vs. pure-JAX reference.
    ref_mse = jnp.mean((image - encoder_out) ** 2)
    x, y = decoder_logits, fingerprint
    ref_bce = jnp.mean(jnp.maximum(x, 0.0) - x * y
                       + jnp.log1p(jnp.exp(-jnp.abs(x))))
    ref_total = active_mse_weight * ref_mse + bce_weight * ref_bce
    assert jnp.allclose(out["mse"], ref_mse, rtol=1e-5, atol=1e-6)
    assert jnp.allclose(out["bce"], ref_bce, rtol=1e-5, atol=1e-6)
    assert jnp.allclose(out["total"], ref_total, rtol=1e-5, atol=1e-6)

    print("KERNEL_OK")
</pallas_src>

<mosaic_0001>
module attributes {stable_mosaic.version = 11 : i64} {
  func.func @kernel(%arg0: i32, %arg1: i32, %arg2: memref<16x128xf32, #tpu.memory_space<vmem>>, %arg3: memref<16x128xf32, #tpu.memory_space<vmem>>, %arg4: memref<2x128xf32, #tpu.memory_space<vmem>>, %arg5: memref<2x128xf32, #tpu.memory_space<vmem>>, %arg6: memref<1x8x128xf32, #tpu.memory_space<vmem>>, %arg7: memref<16x128xf32, #tpu.memory_space<vmem>>) attributes {dimension_semantics = [#tpu.dimension_semantics<parallel>, #tpu.dimension_semantics<arbitrary>], iteration_bounds = array<i64: 2, 1>, scalar_prefetch = 0 : i64, scratch_operands = 1 : i64, tpu.core_type = #tpu.core_type<tc>, window_params = [{transform_indices = @transform_0, window_bounds = array<i64: 16, 128>}, {transform_indices = @transform_1, window_bounds = array<i64: 16, 128>}, {pipeline_mode = #tpu.pipeline_mode<synchronous>, transform_indices = @transform_2, window_bounds = array<i64: 2, 128>}, {pipeline_mode = #tpu.pipeline_mode<synchronous>, transform_indices = @transform_3, window_bounds = array<i64: 2, 128>}, {transform_indices = @transform_4, window_bounds = array<i64: 1, 8, 128>}]} {
    %c1_i32 = arith.constant 1 : i32
    %0 = arith.muli %arg0, %c1_i32 : i32
    %1 = arith.addi %0, %arg1 : i32
    %c16_i32 = arith.constant 16 : i32
    %2 = arith.muli %1, %c16_i32 : i32
    %3 = tpu.iota {dimensions = array<i32: 0>} : vector<16x1xi32>
    %4 = vector.broadcast %2 : i32 to vector<16x1xi32>
    %5 = arith.addi %4, %3 : vector<16x1xi32>
    %c16_i32_0 = arith.constant 16 : i32
    %6 = vector.broadcast %c16_i32_0 : i32 to vector<16x1xi32>
    %7 = arith.cmpi slt, %5, %6 : vector<16x1xi32>
    %c0 = arith.constant 0 : index
    %c0_1 = arith.constant 0 : index
    %8 = vector.load %arg2[%c0, %c0_1] : memref<16x128xf32, #tpu.memory_space<vmem>>, vector<16x128xf32>
    %c0_2 = arith.constant 0 : index
    %c0_3 = arith.constant 0 : index
    %9 = vector.load %arg3[%c0_2, %c0_3] : memref<16x128xf32, #tpu.memory_space<vmem>>, vector<16x128xf32>
    %10 = arith.subf %8, %9 : vector<16x128xf32>
    %11 = arith.mulf %10, %10 : vector<16x128xf32>
    %cst = arith.constant 0.000000e+00 : f32
    %12 = vector.shape_cast %7 : vector<16x1xi1> to vector<16x1xi1>
    %13 = vector.broadcast %12 : vector<16x1xi1> to vector<16x128xi1>
    %14 = vector.broadcast %cst : f32 to vector<16x128xf32>
    %15 = arith.select %13, %11, %14 : vector<16x128xi1>, vector<16x128xf32>
    %c0_i32 = arith.constant 0 : i32
    %16 = arith.cmpi eq, %arg1, %c0_i32 : i32
    %17 = arith.extui %16 : i1 to i32
    %c0_i32_4 = arith.constant 0 : i32
    %18 = arith.cmpi ne, %17, %c0_i32_4 : i32
    scf.if %18 {
      %c0_9 = arith.constant 0 : index
      %c0_10 = arith.constant 0 : index
      %25 = vector.load %arg7[%c0_9, %c0_10] : memref<16x128xf32, #tpu.memory_space<vmem>>, vector<16x128xf32>
      tpu.vector_store %arg7[%c0_9, %c0_10], %15 {strides = array<i32>} : memref<16x128xf32, #tpu.memory_space<vmem>>, vector<16x128xf32>,
    } else {
    }
    %c0_i32_5 = arith.constant 0 : i32
    %19 = arith.cmpi ne, %arg1, %c0_i32_5 : i32
    %20 = arith.extui %19 : i1 to i32
    %c0_i32_6 = arith.constant 0 : i32
    %21 = arith.cmpi ne, %20, %c0_i32_6 : i32
    scf.if %21 {
      %c0_9 = arith.constant 0 : index
      %c0_10 = arith.constant 0 : index
      %25 = vector.load %arg7[%c0_9, %c0_10] : memref<16x128xf32, #tpu.memory_space<vmem>>, vector<16x128xf32>
      %26 = arith.addf %25, %15 : vector<16x128xf32>
      %c0_11 = arith.constant 0 : index
      %c0_12 = arith.constant 0 : index
      %27 = vector.load %arg7[%c0_11, %c0_12] : memref<16x128xf32, #tpu.memory_space<vmem>>, vector<16x128xf32>
      tpu.vector_store %arg7[%c0_11, %c0_12], %26 {strides = array<i32>} : memref<16x128xf32, #tpu.memory_space<vmem>>, vector<16x128xf32>,
    } else {
    }
    %c0_i32_7 = arith.constant 0 : i32
    %22 = arith.cmpi eq, %arg1, %c0_i32_7 : i32
    %23 = arith.extui %22 : i1 to i32
    %c0_i32_8 = arith.constant 0 : i32
    %24 = arith.cmpi ne, %23, %c0_i32_8 : i32
    scf.if %24 {
      %c0_9 = arith.constant 0 : index
      %c0_10 = arith.constant 0 : index
      %25 = vector.load %arg7[%c0_9, %c0_10] : memref<16x128xf32, #tpu.memory_space<vmem>>, vector<16x128xf32>
      %26 = vector.shape_cast %25 : vector<16x128xf32> to vector<1x16x128xf32>
      %cst_11 = arith.constant dense<0.000000e+00> : vector<1xf32>
      %27 = vector.multi_reduction <add>, %26, %cst_11 [1, 2] : vector<1x16x128xf32> to vector<1xf32>
      %28 = vector.shape_cast %27 : vector<1xf32> to vector<1x1x1xf32>
      %29 = vector.extract %28[0, 0, 0] : f32 from vector<1x1x1xf32>
      %c0_12 = arith.constant 0 : index
      %c0_13 = arith.constant 0 : index
      %30 = vector.load %arg4[%c0_12, %c0_13] : memref<2x128xf32, #tpu.memory_space<vmem>>, vector<2x128xf32>
      %c0_14 = arith.constant 0 : index
      %c0_15 = arith.constant 0 : index
      %31 = vector.load %arg5[%c0_14, %c0_15] : memref<2x128xf32, #tpu.memory_space<vmem>>, vector<2x128xf32>
      %cst_16 = arith.constant 0.000000e+00 : f32
      %32 = vector.broadcast %cst_16 : f32 to vector<2x128xf32>
      %33 = arith.maximumf %30, %32 : vector<2x128xf32>
      %34 = arith.mulf %30, %31 : vector<2x128xf32>
      %35 = arith.subf %33, %34 : vector<2x128xf32>
      %36 = math.absf %30 : vector<2x128xf32>
      %cst_17 = arith.constant 0.000000e+00 : f32
      %37 = vector.broadcast %cst_17 : f32 to vector<2x128xf32>
      %38 = arith.subf %37, %36 : vector<2x128xf32>
      %39 = math.exp %38 : vector<2x128xf32>
      %40 = math.log1p %39 : vector<2x128xf32>
      %41 = arith.addf %35, %40 : vector<2x128xf32>
      %42 = tpu.iota {dimensions = array<i32: 0>} : vector<2x128xi32>
      %43 = tpu.iota {dimensions = array<i32: 1>} : vector<2x128xi32>
      %c128_i32 = arith.constant 128 : i32
      %44 = vector.broadcast %c128_i32 : i32 to vector<2x128xi32>
      %45 = arith.muli %42, %44 : vector<2x128xi32>
      %46 = arith.addi %45, %43 : vector<2x128xi32>
      %c200_i32 = arith.constant 200 : i32
      %47 = vector.broadcast %c200_i32 : i32 to vector<2x128xi32>
      %48 = arith.cmpi slt, %46, %47 : vector<2x128xi32>
      %cst_18 = arith.constant 0.000000e+00 : f32
      %49 = vector.broadcast %cst_18 : f32 to vector<2x128xf32>
      %50 = arith.select %48, %41, %49 : vector<2x128xi1>, vector<2x128xf32>
      %c0_i32_19 = arith.constant 0 : i32
      %51 = arith.cmpi eq, %arg0, %c0_i32_19 : i32
      %52 = vector.shape_cast %50 : vector<2x128xf32> to vector<1x2x128xf32>
      %cst_20 = arith.constant dense<0.000000e+00> : vector<1xf32>
      %53 = vector.multi_reduction <add>, %52, %cst_20 [1, 2] : vector<1x2x128xf32> to vector<1xf32>
      %54 = vector.shape_cast %53 : vector<1xf32> to vector<1x1x1xf32>
      %55 = vector.extract %54[0, 0, 0] : f32 from vector<1x1x1xf32>
      %cst_21 = arith.constant 0.000000e+00 : f32
      %56 = arith.select %51, %55, %cst_21 : f32
      %57 = tpu.iota {dimensions = array<i32: 2>} : vector<1x8x128xi32>
      %c0_i32_22 = arith.constant 0 : i32
      %58 = vector.broadcast %c0_i32_22 : i32 to vector<1x8x128xi32>
      %59 = arith.cmpi eq, %57, %58 : vector<1x8x128xi32>
      %c1_i32_23 = arith.constant 1 : i32
      %60 = vector.broadcast %c1_i32_23 : i32 to vector<1x8x128xi32>
      %61 = arith.cmpi eq, %57, %60 : vector<1x8x128xi32>
      %cst_24 = arith.constant 0.000000e+00 : f32
      %62 = vector.broadcast %56 : f32 to vector<1x8x128xf32>
      %63 = vector.broadcast %cst_24 : f32 to vector<1x8x128xf32>
      %64 = arith.select %61, %62, %63 : vector<1x8x128xi1>, vector<1x8x128xf32>
      %65 = vector.broadcast %29 : f32 to vector<1x8x128xf32>
      %66 = arith.select %59, %65, %64 : vector<1x8x128xi1>, vector<1x8x128xf32>
      %c0_25 = arith.constant 0 : index
      %c0_26 = arith.constant 0 : index
      %c0_27 = arith.constant 0 : index
      %67 = vector.load %arg6[%c0_25, %c0_26, %c0_27] : memref<1x8x128xf32, #tpu.memory_space<vmem>>, vector<1x8x128xf32>
      tpu.vector_store %arg6[%c0_25, %c0_26, %c0_27], %66 {strides = array<i32>} : memref<1x8x128xf32, #tpu.memory_space<vmem>>, vector<1x8x128xf32>,
    } else {
    }
    return
  }
  func.func @transform_0(%arg0: i32, %arg1: i32) -> (i32, i32) {
    %c1_i32 = arith.constant 1 : i32
    %0 = arith.muli %arg0, %c1_i32 : i32
    %1 = arith.addi %0, %arg1 : i32
    %c0_i32 = arith.constant 0 : i32
    %2 = arith.minsi %1, %c0_i32 : i32
    %c0_i32_0 = arith.constant 0 : i32
    %c0_i32_1 = arith.constant 0 : i32
    return %2, %c0_i32_0 : i32, i32
  }
  func.func @transform_1(%arg0: i32, %arg1: i32) -> (i32, i32) {
    %c1_i32 = arith.constant 1 : i32
    %0 = arith.muli %arg0, %c1_i32 : i32
    %1 = arith.addi %0, %arg1 : i32
    %c0_i32 = arith.constant 0 : i32
    %2 = arith.minsi %1, %c0_i32 : i32
    %c0_i32_0 = arith.constant 0 : i32
    %c0_i32_1 = arith.constant 0 : i32
    return %2, %c0_i32_0 : i32, i32
  }
  func.func @transform_2(%arg0: i32, %arg1: i32) -> (i32, i32) {
    %c0_i32 = arith.constant 0 : i32
    %c0_i32_0 = arith.constant 0 : i32
    %c0_i32_1 = arith.constant 0 : i32
    return %c0_i32, %c0_i32_0 : i32, i32
  }
  func.func @transform_3(%arg0: i32, %arg1: i32) -> (i32, i32) {
    %c0_i32 = arith.constant 0 : i32
    %c0_i32_0 = arith.constant 0 : i32
    %c0_i32_1 = arith.constant 0 : i32
    return %c0_i32, %c0_i32_0 : i32, i32
  }
  func.func @transform_4(%arg0: i32, %arg1: i32) -> (i32, i32, i32) {
    %c0_i32 = arith.constant 0 : i32
    %c0_i32_0 = arith.constant 0 : i32
    %c0_i32_1 = arith.constant 0 : i32
    return %arg0, %c0_i32, %c0_i32_0 : i32, i32, i32
  }
}

</mosaic_0001>

<llo_original>
// kernel: stegastamp_loss.1
$region0: #{stegastamp_loss.1}
  #allocation0 [shape = 'u32[]', space=smem, size = 0x4, offset = 0x4, fixed_abs, tag = 'smem constant byte address 0x4 - core index']
  #allocation1 [shape = 'u32[72,128]{1,0:T(1,128)}', space=vmem, size = 0x9000, scoped, tag = 'internal scratch']
  #allocation2 [shape = 'f32[16,128]{1,0:T(8,128)}', space=vmem, size = 0x2000, scoped, tag = 'scratch operand']
  %s0 = inlined_call_operand.vmem [shape: f32[16,128], index: 0, kind: input, shape index: {}]
  %s1 = inlined_call_operand.vmem [shape: f32[16,128], index: 1, kind: input, shape index: {}]
  %s2 = inlined_call_operand.vmem [shape: f32[2,128], index: 2, kind: input, shape index: {}]
  %s3 = inlined_call_operand.vmem [shape: f32[2,128], index: 3, kind: input, shape index: {}]
  %s4 = inlined_call_operand.vmem [shape: f32[2,8,128], index: 4, kind: output, shape index: {}]
  %s5 = sld [smem:[#allocation0]]
  $region61: #{stegastamp_loss.1} parent=0
    _
  %s7 = ssub.s32 1, %s5
  %s8 = scalar_select 0, %s7, %s5
  loop: start=0, step=1, limit=4
  $region2: #{stegastamp_loss.1} parent=0 // loop_pre_header
    _
  $region3: #{stegastamp_loss.1} parent=0 // loop_header
    %s10 = sphi 0, %s14
    %p11 = scmp.ge.s32.totalorder %s10, 4
    %s17 = sphi 0, %s29
    %s18 = sphi 0, %s25
    %s19 = sphi 0, %s17
    %s20 = sphi 0, %s18
    %s21 = sphi 0, %s19
    %s22 = sphi 0, %s20
    %s38 = sphi 0, %s40
    %s41 = sphi 0, %s38
    %s42 = sphi 0, %s41
    %s58 = sphi 0, %s42
    %s70 = sphi 0, %s72
    %s73 = sphi 0, %s70
    %s74 = sphi 0, %s73
    %s90 = sphi 0, %s74
    %s94 = sphi 0, %s94
    %s96 = sphi 0, %s94
    %s97 = sphi 0, %s96
    %s111 = sphi 0, %s97
    %s115 = sphi 0, %s115
    %s117 = sphi 0, %s115
    %s118 = sphi 0, %s117
    %s132 = sphi 0, %s118
    %s138 = sphi 0, %s140
    %s141 = sphi 0, %s138
    %s142 = sphi 0, %s141
    %s158 = sphi 0, %s142
  $region4: #{stegastamp_loss.1} parent=0 // loop_header_branch
    %13 = sbr.rel (%p11) target = $region8
  $region5: #{stegastamp_loss.1} parent=0 // loop_body
    %s15 = ssub.s32 %s10, 1
    %s16 = ssub.s32 %s10, 2
    %s23 = sadd.s32 1, %s18
    %p24 = scmp.ge.s32.totalorder %s23, 1
    %s25 = scalar_select %p24, 0, %s23
    %s26 = sadd.s32 1, %s17
    %s27 = scalar_select %p24, %s26, %s17
    %p28 = scmp.ge.s32.totalorder %s27, 2
    %s29 = scalar_select %p28, 0, %s27
    %s30 = sadd.s32 %s17, %s18
    %p31 = scmp.lt.s32.totalorder %s30, 0
    %s32 = scalar_select %p31, %s30, 0
    %s33 = sadd.s32 %s29, %s25
    %p34 = scmp.lt.s32.totalorder %s33, 0
    %s35 = scalar_select %p34, %s33, 0
    %s36 = ssub.s32 %s32, %s35
    %p37 = scmp.eq.s32.totalorder %s36, 0
    %s39 = sadd.s32 %s38, 1
    %s40 = scalar_select %p37, %s38, %s39
    %p43 = pneg %p37
    %p44 = scmp.eq.s32.totalorder %s10, 1
    %p45 = por %p43, %p44
    %p46 = scmp.ne.s32.totalorder %s38, %s41
    %p47 = scmp.eq.s32.totalorder %s10, 0
    %p48 = por %p46, %p47
    %p49 = scmp.ne.s32.totalorder %s38, %s41
    %p50 = scmp.eq.s32.totalorder %s15, 1
    %p51 = por %p49, %p50
    %p52 = scmp.ne.s32.totalorder %s41, %s42
    %p53 = scmp.eq.s32.totalorder %s15, 0
    %p54 = por %p52, %p53
    %p55 = scmp.ne.s32.totalorder %s41, %s42
    %p56 = scmp.eq.s32.totalorder %s16, 1
    %p57 = por %p55, %p56
    %p59 = scmp.ne.s32.totalorder %s42, %s58
    %p60 = scmp.eq.s32.totalorder %s16, 0
    %p61 = por %p59, %p60
    %s62 = sadd.s32 %s17, %s18
    %p63 = scmp.lt.s32.totalorder %s62, 0
    %s64 = scalar_select %p63, %s62, 0
    %s65 = sadd.s32 %s29, %s25
    %p66 = scmp.lt.s32.totalorder %s65, 0
    %s67 = scalar_select %p66, %s65, 0
    %s68 = ssub.s32 %s64, %s67
    %p69 = scmp.eq.s32.totalorder %s68, 0
    %s71 = sadd.s32 %s70, 1
    %s72 = scalar_select %p69, %s70, %s71
    %p75 = pneg %p69
    %p76 = scmp.eq.s32.totalorder %s10, 1
    %p77 = por %p75, %p76
    %p78 = scmp.ne.s32.totalorder %s70, %s73
    %p79 = scmp.eq.s32.totalorder %s10, 0
    %p80 = por %p78, %p79
    %p81 = scmp.ne.s32.totalorder %s70, %s73
    %p82 = scmp.eq.s32.totalorder %s15, 1
    %p83 = por %p81, %p82
    %p84 = scmp.ne.s32.totalorder %s73, %s74
    %p85 = scmp.eq.s32.totalorder %s15, 0
    %p86 = por %p84, %p85
    %p87 = scmp.ne.s32.totalorder %s73, %s74
    %p88 = scmp.eq.s32.totalorder %s16, 1
    %p89 = por %p87, %p88
    %p91 = scmp.ne.s32.totalorder %s74, %s90
    %p92 = scmp.eq.s32.totalorder %s16, 0
    %p93 = por %p91, %p92
    %s95 = sadd.s32 %s94, 1
    %p98 = scmp.eq.s32.totalorder %s10, 1
    %p99 = scmp.ne.s32.totalorder %s94, %s96
    %p100 = scmp.eq.s32.totalorder %s10, 0
    %p101 = por %p99, %p100
    %p102 = scmp.ne.s32.totalorder %s94, %s96
    %p103 = scmp.eq.s32.totalorder %s15, 1
    %p104 = por %p102, %p103
    %p105 = scmp.ne.s32.totalorder %s96, %s97
    %p106 = scmp.eq.s32.totalorder %s15, 0
    %p107 = por %p105, %p106
    %p108 = scmp.ne.s32.totalorder %s96, %s97
    %p109 = scmp.eq.s32.totalorder %s16, 1
    %p110 = por %p108, %p109
    %p112 = scmp.ne.s32.totalorder %s97, %s111
    %p113 = scmp.eq.s32.totalorder %s16, 0
    %p114 = por %p112, %p113
    %s116 = sadd.s32 %s115, 1
    %p119 = scmp.eq.s32.totalorder %s10, 1
    %p120 = scmp.ne.s32.totalorder %s115, %s117
    %p121 = scmp.eq.s32.totalorder %s10, 0
    %p122 = por %p120, %p121
    %p123 = scmp.ne.s32.totalorder %s115, %s117
    %p124 = scmp.eq.s32.totalorder %s15, 1
    %p125 = por %p123, %p124
    %p126 = scmp.ne.s32.totalorder %s117, %s118
    %p127 = scmp.eq.s32.totalorder %s15, 0
    %p128 = por %p126, %p127
    %p129 = scmp.ne.s32.totalorder %s117, %s118
    %p130 = scmp.eq.s32.totalorder %s16, 1
    %p131 = por %p129, %p130
    %p133 = scmp.ne.s32.totalorder %s118, %s132
    %p134 = scmp.eq.s32.totalorder %s16, 0
    %p135 = por %p133, %p134
    %s136 = ssub.s32 %s17, %s29
    %p137 = scmp.eq.s32.totalorder %s136, 0
    %s139 = sadd.s32 %s138, 1
    %s140 = scalar_select %p137, %s138, %s139
    %p143 = pneg %p137
    %p144 = scmp.eq.s32.totalorder %s10, 1
    %p145 = por %p143, %p144
    %p146 = scmp.ne.s32.totalorder %s138, %s141
    %p147 = scmp.eq.s32.totalorder %s10, 0
    %p148 = por %p146, %p147
    %p149 = scmp.ne.s32.totalorder %s138, %s141
    %p150 = scmp.eq.s32.totalorder %s15, 1
    %p151 = por %p149, %p150
    %p152 = scmp.ne.s32.totalorder %s141, %s142
    %p153 = scmp.eq.s32.totalorder %s15, 0
    %p154 = por %p152, %p153
    %p155 = scmp.ne.s32.totalorder %s141, %s142
    %p156 = scmp.eq.s32.totalorder %s16, 1
    %p157 = por %p155, %p156
    %p159 = scmp.ne.s32.totalorder %s142, %s158
    %p160 = scmp.eq.s32.totalorder %s16, 0
    %p161 = por %p159, %p160
    %p162 = scmp.le.s32.totalorder 1, %s10
    %p163 = scmp.lt.s32.totalorder %s10, 3
    %p164 = pnand %p162, %p163
    %p165 = pneg %p164
    // Predicated region
    $region9: #{stegastamp_loss.1} parent=5 // pred_check
      _
    $region10: #{stegastamp_loss.1} parent=5 // pred_check_branch
      %167 = sbr.rel (%p164) target = $region12
    $region11: #{stegastamp_loss.1} parent=5 // pred_region
      %s168 = ssub.s32 %s10, 1
      // Predicated region
      $region13: #{stegastamp_loss.1} parent=11 // pred_check
        %p169 = pneg %p107
      $region14: #{stegastamp_loss.1} parent=11 // pred_check_branch
        %171 = sbr.rel (%p169) target = $region16
      $region15: #{stegastamp_loss.1} parent=11 // pred_region
        _
      $region16: #{stegastamp_loss.1} parent=11 // pred_fallthru
        _
      // Predicated region
      $region17: #{stegastamp_loss.1} parent=11 // pred_check
        %p172 = pneg %p128
      $region18: #{stegastamp_loss.1} parent=11 // pred_check_branch
        %174 = sbr.rel (%p172) target = $region20
      $region19: #{stegastamp_loss.1} parent=11 // pred_region
        _
      $region20: #{stegastamp_loss.1} parent=11 // pred_fallthru
        _
    $region12: #{stegastamp_loss.1} parent=5 // pred_fallthru
      _
    %p175 = scmp.lt.s32.totalorder %s10, 2
    // Predicated region
    $region21: #{stegastamp_loss.1} parent=5 // pred_check
      %p176 = pneg %p175
    $region22: #{stegastamp_loss.1} parent=5 // pred_check_branch
      %178 = sbr.rel (%p176) target = $region24
    $region23: #{stegastamp_loss.1} parent=5 // pred_region
      // Predicated region
      $region25: #{stegastamp_loss.1} parent=23 // pred_check
        %p179 = pneg %p48
      $region26: #{stegastamp_loss.1} parent=23 // pred_check_branch
        %181 = sbr.rel (%p179) target = $region28
      $region27: #{stegastamp_loss.1} parent=23 // pred_region
        %s182 = sadd.s32 %s17, %s18
        %p183 = scmp.lt.s32.totalorder %s182, 0
        %s184 = scalar_select %p183, %s182, 0
        %s185 = smul.u32 2, %s184
        %p186 = scmp.lt.s32.totalorder %s185, 1
        %s187 = scalar_select %p186, %s185, 1
        %s188 = smul.addr %s187, 8
        %s189 = scalar_lea.vmem %s0, %s188
        %s190 = sadd.s32 %s17, %s18
        %p191 = scmp.lt.s32.totalorder %s190, 0
        %s192 = scalar_select %p191, %s190, 0
        %s193 = smul.u32 2, %s192
      $region28: #{stegastamp_loss.1} parent=23 // pred_fallthru
        _
      // Predicated region
      $region29: #{stegastamp_loss.1} parent=23 // pred_check
        %p194 = pneg %p80
      $region30: #{stegastamp_loss.1} parent=23 // pred_check_branch
        %196 = sbr.rel (%p194) target = $region32
      $region31: #{stegastamp_loss.1} parent=23 // pred_region
        %s197 = sadd.s32 %s17, %s18
        %p198 = scmp.lt.s32.totalorder %s197, 0
        %s199 = scalar_select %p198, %s197, 0
        %s200 = smul.u32 2, %s199
        %p201 = scmp.lt.s32.totalorder %s200, 1
        %s202 = scalar_select %p201, %s200, 1
        %s203 = smul.addr %s202, 8
        %s204 = scalar_lea.vmem %s1, %s203
        %s205 = sadd.s32 %s17, %s18
        %p206 = scmp.lt.s32.totalorder %s205, 0
        %s207 = scalar_select %p206, %s205, 0
        %s208 = smul.u32 2, %s207
      $region32: #{stegastamp_loss.1} parent=23 // pred_fallthru
        _
    $region24: #{stegastamp_loss.1} parent=5 // pred_fallthru
      _
    %p209 = scmp.le.s32.totalorder 1, %s10
    %p210 = scmp.lt.s32.totalorder %s10, 3
    %p211 = pnand %p209, %p210
    %p212 = pneg %p211
    // Predicated region
    $region33: #{stegastamp_loss.1} parent=5 // pred_check
      _
    $region34: #{stegastamp_loss.1} parent=5 // pred_check_branch
      %214 = sbr.rel (%p211) target = $region36
    $region35: #{stegastamp_loss.1} parent=5 // pred_region
      %s215 = ssub.s32 %s10, 1
      %s216 = sadd.s32 %s19, %s20
      %p217 = scmp.lt.s32.totalorder %s216, 0
      %s218 = scalar_select %p217, %s216, 0
      %s219 = smul.u32 2, %s218
      %p220 = scmp.lt.s32.totalorder %s219, 1
      %s221 = scalar_select %p220, %s219, 1
      %s222 = smul.addr %s221, 8
      %s223 = scalar_lea.vmem %s0, %s222
      %p224 = pneg %p54
      %p225 = pneg %p51
      %s226 = sadd.s32 %s19, %s20
      %p227 = scmp.lt.s32.totalorder %s226, 0
      %s228 = scalar_select %p227, %s226, 0
      %s229 = smul.u32 2, %s228
      %p230 = scmp.lt.s32.totalorder %s229, 1
      %s231 = scalar_select %p230, %s229, 1
      %s232 = smul.addr %s231, 8
      %s233 = scalar_lea.vmem %s1, %s232
      %p234 = pneg %p86
      %p235 = pneg %p83
      %p236 = pneg %p107
      %p237 = pneg %p104
      %p238 = pneg %p128
      %p239 = pneg %p125
      %p240 = pneg %p154
      %p241 = pneg %p151
      %p242 = scmp.lt.s32.totalorder %s19, 1
      %s243 = scalar_select %p242, %s19, 1
      %s244 = smul.addr %s243, 8
      %s245 = scalar_lea.vmem %s4, %s244
      %s246 = sadd.s32 %s19, %s20
      %p247 = scmp.lt.s32.totalorder %s246, 0
      %s248 = scalar_select %p247, %s246, 0
      %s249 = smul.u32 2, %s248
      %p250 = scmp.lt.s32.totalorder %s249, 1
      %s251 = scalar_select %p250, %s249, 1
      %s252 = smul.addr %s251, 8
      %s253 = scalar_lea.vmem %s0, %s252
      %s254 = sadd.s32 %s19, %s20
      %p255 = scmp.lt.s32.totalorder %s254, 0
      %s256 = scalar_select %p255, %s254, 0
      %s257 = smul.u32 2, %s256
      %s258 = sadd.s32 %s19, %s20
      %p259 = scmp.lt.s32.totalorder %s258, 0
      %s260 = scalar_select %p259, %s258, 0
      %s261 = smul.u32 2, %s260
      %p262 = scmp.lt.s32.totalorder %s261, 1
      %s263 = scalar_select %p262, %s261, 1
      %s264 = smul.addr %s263, 8
      %s265 = scalar_lea.vmem %s1, %s264
      %s266 = sadd.s32 %s19, %s20
      %p267 = scmp.lt.s32.totalorder %s266, 0
      %s268 = scalar_select %p267, %s266, 0
      %s269 = smul.u32 2, %s268
      %p270 = scmp.lt.s32.totalorder %s19, 1
      %s271 = scalar_select %p270, %s19, 1
      %s272 = smul.addr %s271, 8
      %s273 = scalar_lea.vmem %s4, %s272
      %s274 = sadd.s32 %s19, %s20
      %s275 = smul.u32 %s274, 16
      %v276 = vlaneseq
      %v277 = vshrl.u32 %v276, 7
      %v278 = vadd.s32 %v277, 8
      %v279 = vstv %s275
      %v280 = vadd.s32 %v279, %v277
      %v281 = vadd.s32 %v279, %v278
      %vm282 = vcmp.lt.s32.totalorder %v280, 16
      %vm283 = vcmp.lt.s32.totalorder %v281, 16
      %v284 = vld [vmem:[%s253] sm:$0xff]
      %v285 = vld [vmem:[%s253 + $0x8] sm:$0xff]
      %v286 = vld [vmem:[%s265] sm:$0xff]
      %v287 = vld [vmem:[%s265 + $0x8] sm:$0xff]
      %v288 = vsub.f32 %v284, %v286
      %v289 = vsub.f32 %v285, %v287
      %v290 = vmul.f32 %v288, %v288
      %v291 = vmul.f32 %v289, %v289
      %v292 = vsel %vm282, 1, 0
      %v293 = vsel %vm283, 1, 0
      %vm294 = vcmp.eq.s32.totalorder %v292, 1
      %vm295 = vcmp.eq.s32.totalorder %v293, 1
      %v296 = vsel %vm294, %v290, 0.0
      %v297 = vsel %vm295, %v291, 0.0
      %p298 = scmp.eq.s32.totalorder %s20, 0
      // Predicated region
      $region37: #{stegastamp_loss.1} parent=35 // pred_check
        %p299 = pneg %p298
      $region38: #{stegastamp_loss.1} parent=35 // pred_check_branch
        %301 = sbr.rel (%p299) target = $region40
      $region39: #{stegastamp_loss.1} parent=35 // pred_region
        %302 = vst [vmem:[#allocation2] sm:$0xff] %v296
        %303 = vst [vmem:[#allocation2 + $0x8] sm:$0xff] %v297
      $region40: #{stegastamp_loss.1} parent=35 // pred_fallthru
        _
      %p304 = scmp.ne.s32.totalorder %s20, 0
      // Predicated region
      $region41: #{stegastamp_loss.1} parent=35 // pred_check
        %p305 = pneg %p304
      $region42: #{stegastamp_loss.1} parent=35 // pred_check_branch
        %307 = sbr.rel (%p305) target = $region44
      $region43: #{stegastamp_loss.1} parent=35 // pred_region
        %v308 = vld [vmem:[#allocation2] sm:$0xff]
        %v309 = vld [vmem:[#allocation2 + $0x8] sm:$0xff]
        %v310 = vadd.f32 %v308, %v296
        %v311 = vadd.f32 %v309, %v297
        %312 = vst [vmem:[#allocation2] sm:$0xff] %v310
        %313 = vst [vmem:[#allocation2 + $0x8] sm:$0xff] %v311
      $region44: #{stegastamp_loss.1} parent=35 // pred_fallthru
        _
      // Predicated region
      $region45: #{stegastamp_loss.1} parent=35 // pred_check
        %p314 = pneg %p298
      $region46: #{stegastamp_loss.1} parent=35 // pred_check_branch
        %316 = sbr.rel (%p314) target = $region48
      $region47: #{stegastamp_loss.1} parent=35 // pred_region
        %v317 = vld [vmem:[#allocation2] sm:$0xff]
        %v318 = vld [vmem:[#allocation2 + $0x8] sm:$0xff]
        %v319 = vadd.f32 %v317, %v318
        %320 = vadd.xlane.f32.xlu0 %v319
        %v321 = vpop.xlane.xlu0 %320
        %v322 = vrot.slane %v321, 4
        %v323 = vadd.f32 %v321, %v322
        %v324 = vrot.slane %v323, 2
        %v325 = vadd.f32 %v323, %v324
        %v326 = vrot.slane %v325, 1
        %v327 = vadd.f32 %v325, %v326
        %s328 = vtos %v327
        %v329 = vld [vmem:[%s2] sm:$0x3]
        %v330 = vld [vmem:[%s3] sm:$0x3]
        %v331 = vmax.f32 %v329, 0.0
        %v332 = vmul.f32 %v329, %v330
        %v333 = vsub.f32 %v331, %v332
        %v334 = vand.u32 2147483647, %v329
        %v335 = vsub.f32 0.0, %v334
        %v336 = vmul.f32 %v335, 1.442695
        %v337 = vpow.pop %v336
        %v338 = vadd.f32 %v337, 1.0
        %v339 = vlog2.pop %v338
        %v340 = vmul.f32 %v339, 0.6931472
        %v341 = vmul.f32 -0.5, %v337
        %v342 = vadd.f32 %v341, 1.0
        %v343 = vmul.f32 %v342, %v337
        %v344 = vand.u32 2147483647, %v337
        %vm345 = vcmp.lt.f32.partialorder %v344, 0.0004427343
        %v346 = vsel %vm345, %v343, %v340
        %v347 = vadd.f32 %v333, %v346
        %v348 = vlaneseq
        %v349 = vand.u32 %v348, 127
        %v350 = vmul.u32 %v277, 128
        %v351 = vadd.s32 %v350, %v349
        %vm352 = vcmp.lt.s32.totalorder %v351, 200
        %v353 = vsel %vm352, %v347, 0.0
        %p354 = scmp.eq.s32.totalorder %s19, 0
        %vm355 = vcmask 1041408
        %v356 = vsel %vm355, %v353, 0.0
        %357 = vadd.xlane.f32.xlu0 %v356
        %v358 = vpop.xlane.xlu0 %357
        %v359 = vrot.slane %v358, 4
        %v360 = vadd.f32 %v358, %v359
        %v361 = vrot.slane %v360, 2
        %v362 = vadd.f32 %v360, %v361
        %v363 = vrot.slane %v362, 1
        %v364 = vadd.f32 %v362, %v363
        %s365 = vtos %v364
        %s366 = scalar_select %p354, %s365, 0.0
        %vm367 = vcmp.eq.s32.totalorder %v349, 0
        %vm368 = vcmp.eq.s32.totalorder %v349, 1
        %v369 = vstv %s366
        %v370 = vsel %vm368, %v369, 0.0
        %v371 = vstv %s328
        %v372 = vsel %vm367, %v371, %v370
        %373 = vst [vmem:[%s273] sm:$0xff] %v372
      $region48: #{stegastamp_loss.1} parent=35 // pred_fallthru
        _
      %p374 = scmp.lt.s32.totalorder %s19, 1
      %s375 = scalar_select %p374, %s19, 1
      %s376 = smul.addr %s375, 8
      %s377 = scalar_lea.vmem %s4, %s376
      // Predicated region
      $region49: #{stegastamp_loss.1} parent=35 // pred_check
        %p378 = pneg %p151
      $region50: #{stegastamp_loss.1} parent=35 // pred_check_branch
        %380 = sbr.rel (%p378) target = $region52
      $region51: #{stegastamp_loss.1} parent=35 // pred_region
        _
      $region52: #{stegastamp_loss.1} parent=35 // pred_fallthru
        _
    $region36: #{stegastamp_loss.1} parent=5 // pred_fallthru
      _
    %p381 = scmp.le.s32.totalorder 2, %s10
    // Predicated region
    $region53: #{stegastamp_loss.1} parent=5 // pred_check
      %p382 = pneg %p381
    $region54: #{stegastamp_loss.1} parent=5 // pred_check_branch
      %384 = sbr.rel (%p382) target = $region56
    $region55: #{stegastamp_loss.1} parent=5 // pred_region
      %s385 = ssub.s32 %s10, 2
      // Predicated region
      $region57: #{stegastamp_loss.1} parent=55 // pred_check
        %p386 = pneg %p157
      $region58: #{stegastamp_loss.1} parent=55 // pred_check_branch
        %388 = sbr.rel (%p386) target = $region60
      $region59: #{stegastamp_loss.1} parent=55 // pred_region
        %p389 = scmp.lt.s32.totalorder %s21, 1
        %s390 = scalar_select %p389, %s21, 1
        %s391 = smul.addr %s390, 8
        %s392 = scalar_lea.vmem %s4, %s391
      $region60: #{stegastamp_loss.1} parent=55 // pred_fallthru
        _
    $region56: #{stegastamp_loss.1} parent=5 // pred_fallthru
      _
  $region6: #{stegastamp_loss.1} parent=0 // loop_footer
    %s14 = sadd.s32 1, %s10
  $region7: #{stegastamp_loss.1} parent=0 // loop_footer_branch
    %9 = sbr.rel target = $region3
  $region8: #{stegastamp_loss.1} parent=0 // loop_exit
    _

</llo_original>
